<compile_context>
chip_gen: v5e
topology: v5e:2x2
jax: 0.10.0
libtpu: 0.0.40
codegen_flags: <defaults>
</compile_context>

<pallas_src>
import functools

import jax
import jax.numpy as jnp
from jax.experimental import pallas as pl
from jax.experimental.pallas import tpu as pltpu

INPUT_CHANNELS = 1
LANE = 128
VMEM_LIMIT = 48 * 1024 * 1024        # leaves headroom on v7x's 64 MiB VMEM
RESIDENT_H_BYTES = 16 * 1024 * 1024  # budget for a fully VMEM-resident h_src


def _round_up(x, m):
    return (x + m - 1) // m * m


def _pad2(a, rows, cols):
    out = jnp.zeros((rows, cols), a.dtype)
    return out.at[: a.shape[0], : a.shape[1]].set(a)


def _pick_tile(n_pad, requested, min_tiles=1):
    """Largest multiple of LANE dividing n_pad, <= requested, leaving >= min_tiles tiles."""
    requested = max(requested, LANE)
    best = LANE
    t = LANE
    while t <= n_pad:
        if n_pad % t == 0 and t <= requested and n_pad // t >= min_tiles:
            best = t
        t += LANE
    return best


# ---------------------------------------------------------------------------
# Kernel 1: one GraphConv layer (optionally fused ReLU).
# grid = (dst-row tiles ["parallel"], src-col tiles ["arbitrary" reduction])
# ---------------------------------------------------------------------------
def _graph_conv_kernel(adj_ref, h_src_ref, h_dst_ref, w_rel_ref, w_root_ref,
                       b_ref, out_ref, acc_ref, *, apply_relu, tk, resident_h):
    k = pl.program_id(1)

    @pl.when(k == 0)
    def _():
        acc_ref[...] = jnp.zeros_like(acc_ref)

    # Partial neighbor aggregation: adj[dst_tile, src_tile] @ h[src_tile].
    if resident_h:
        # h_src is fully VMEM-resident; slice out the current src tile.
        src_off = pl.multiple_of(k * tk, tk)
        h_src = h_src_ref[pl.ds(src_off, tk), :]
    else:
        h_src = h_src_ref[...]
    acc_ref[...] += jnp.dot(adj_ref[...], h_src,
                            preferred_element_type=jnp.float32)

    @pl.when(k == pl.num_programs(1) - 1)
    def _():
        # Two K=hp MXU dots (no lane-axis concat / VMEM copy):
        #   out = agg @ W_rel + x @ W_root + b
        out = (jnp.dot(acc_ref[...].astype(jnp.bfloat16), w_rel_ref[...],
                       preferred_element_type=jnp.float32)
               + jnp.dot(h_dst_ref[...], w_root_ref[...],
                         preferred_element_type=jnp.float32)
               + b_ref[...])
        if apply_relu:
            out = jnp.maximum(out, 0.0)
        out_ref[...] = out.astype(out_ref.dtype)


def _graph_conv_layer(adj, h, w_rel, w_root, b, *, apply_relu, tm, tk, resident_h):
    n_pad = adj.shape[0]
    hp = h.shape[1]
    grid = (n_pad // tm, n_pad // tk)

    if resident_h:
        # Constant index_map -> fetched once, kept resident across the grid.
        h_src_spec = pl.BlockSpec((n_pad, hp), lambda i, k: (0, 0))
    else:
        h_src_spec = pl.BlockSpec((tk, hp), lambda i, k: (k, 0))

    kernel = functools.partial(_graph_conv_kernel, apply_relu=apply_relu,
                               tk=tk, resident_h=resident_h)
    return pl.pallas_call(
        kernel,
        out_shape=jax.ShapeDtypeStruct((n_pad, hp), jnp.bfloat16),
        grid_spec=pltpu.PrefetchScalarGridSpec(
            num_scalar_prefetch=0,
            grid=grid,
            in_specs=[
                pl.BlockSpec((tm, tk), lambda i, k: (i, k)),    # adj tile (streamed)
                h_src_spec,                                     # h (src rows)
                pl.BlockSpec((tm, hp), lambda i, k: (i, 0)),    # h (dst rows)
                pl.BlockSpec((hp, hp), lambda i, k: (0, 0)),    # W_rel (resident)
                pl.BlockSpec((hp, hp), lambda i, k: (0, 0)),    # W_root (resident)
                pl.BlockSpec((1, hp), lambda i, k: (0, 0)),     # bias (resident)
            ],
            out_specs=pl.BlockSpec((tm, hp), lambda i, k: (i, 0)),
            scratch_shapes=[pltpu.VMEM((tm, hp), jnp.float32)],
        ),
        compiler_params=pltpu.CompilerParams(
            dimension_semantics=("parallel", "arbitrary"),
            vmem_limit_bytes=VMEM_LIMIT,
        ),
    )(adj, h, h, w_rel, w_root, b)


# ---------------------------------------------------------------------------
# Kernel 2: global_mean_pool + Linear head.
# grid = (node tiles ["arbitrary" reduction],)
# ---------------------------------------------------------------------------
def _pool_linear_kernel(pool_ref, h_ref, w_ref, b_ref, out_ref, acc_ref):
    k = pl.program_id(0)

    @pl.when(k == 0)
    def _():
        acc_ref[...] = jnp.zeros_like(acc_ref)

    acc_ref[...] += jnp.dot(pool_ref[...], h_ref[...],
                            preferred_element_type=jnp.float32)

    @pl.when(k == pl.num_programs(0) - 1)
    def _():
        # F.dropout(p=0.5, training=False) -> identity in eval mode.
        # TODO(synk): training-mode dropout would need pltpu.prng_* in-kernel.
        out_ref[...] = (jnp.dot(acc_ref[...].astype(jnp.bfloat16), w_ref[...],
                                preferred_element_type=jnp.float32)
                        + b_ref[...])


def _pool_linear(pool, h, w_lin, b_lin, *, tk):
    g, n_pad = pool.shape
    hp = h.shape[1]
    op = w_lin.shape[1]
    return pl.pallas_call(
        _pool_linear_kernel,
        out_shape=jax.ShapeDtypeStruct((g, op), jnp.float32),
        grid_spec=pltpu.PrefetchScalarGridSpec(
            num_scalar_prefetch=0,
            grid=(n_pad // tk,),
            in_specs=[
                pl.BlockSpec((g, tk), lambda k: (0, k)),    # pooling rows
                pl.BlockSpec((tk, hp), lambda k: (k, 0)),   # node features
                pl.BlockSpec((hp, op), lambda k: (0, 0)),   # lin weight (resident)
                pl.BlockSpec((1, op), lambda k: (0, 0)),    # lin bias (resident)
            ],
            out_specs=pl.BlockSpec((g, op), lambda k: (0, 0)),
            scratch_shapes=[pltpu.VMEM((g, hp), jnp.float32)],
        ),
        compiler_params=pltpu.CompilerParams(
            dimension_semantics=("arbitrary",),
            vmem_limit_bytes=VMEM_LIMIT,
        ),
    )(pool, h, w_lin, b_lin)


# ---------------------------------------------------------------------------
# Forward wrapper.
# ---------------------------------------------------------------------------
def gnn_forward(x, edge_index, batch, params, num_graphs, edge_weight=None,
                *, tm=512, tk=1024, resident_h=None):
    """x: [N, INPUT_CHANNELS] f32, edge_index: [2, E] i32, batch: [N] i32."""
    n_nodes = x.shape[0]
    hidden = params["w_lin"].shape[0]
    out_channels = params["w_lin"].shape[1]
    if edge_weight is None:
        edge_weight = jnp.ones((edge_index.shape[1],), jnp.float32)

    # Lane-dense padded sizes.
    hp = _round_up(max(hidden, INPUT_CHANNELS), LANE)   # padded channel dim
    op = _round_up(out_channels, LANE)                  # padded output dim
    n_pad = _round_up(n_nodes, LANE)

    # Tile selection: big tiles for HBM / MXU efficiency, but keep >= 2 dst-row
    # tiles whenever possible so the "parallel" axis can feed 2 TCs on v7x.
    tm_eff = _pick_tile(n_pad, tm, min_tiles=2)
    tk_eff = _pick_tile(n_pad, tk, min_tiles=1)
    if resident_h is None:
        # Resident h_src (double-buffered bf16) must fit a conservative budget.
        resident_h = (2 * n_pad * hp * 2) <= RESIDENT_H_BYTES

    # Dense adjacency: adj[dst, src] = sum of edge weights for src -> dst,
    # scattered directly into bf16 (the dominant HBM / MXU operand) -- no f32
    # [N, N] materialization + cast.
    # TODO(synk): for very large graphs replace the O(N^2) dense scatter with a
    # CSR/edge-list formulation driven by PrefetchScalarGridSpec.
    # TODO(synk): optionally quantize adj to int8 (v5e/v6e) / fp8 (v7x) to
    # halve adjacency HBM traffic if accuracy budget allows.
    src, dst = edge_index[0], edge_index[1]
    adj = (jnp.zeros((n_pad, n_pad), jnp.bfloat16)
           .at[dst, src].add(edge_weight.astype(jnp.bfloat16)))

    # Mean-pooling matrix [G, N_pad]; padded node columns are zero, so the
    # (finite) garbage on padded node rows never reaches the output.
    onehot = (batch[None, :] == jnp.arange(num_graphs)[:, None]).astype(jnp.float32)
    counts = jnp.maximum(onehot.sum(axis=1, keepdims=True), 1.0)
    pool = _pad2(onehot / counts, num_graphs, n_pad).astype(jnp.bfloat16)

    # Zero-padded node features.
    h = _pad2(x, n_pad, hp).astype(jnp.bfloat16)

    # Per-layer weights, zero-padded to [hp, hp] bf16 (padding stays zero).
    def pw(w):
        return _pad2(w, hp, hp).astype(jnp.bfloat16)

    w1r, w1s, b1 = pw(params["w1_rel"]), pw(params["w1_root"]), _pad2(params["b1"], 1, hp)
    w2r, w2s, b2 = pw(params["w2_rel"]), pw(params["w2_root"]), _pad2(params["b2"], 1, hp)
    w3r, w3s, b3 = pw(params["w3_rel"]), pw(params["w3_root"]), _pad2(params["b3"], 1, hp)
    w_lin = _pad2(params["w_lin"], hp, op).astype(jnp.bfloat16)
    b_lin = _pad2(params["b_lin"], 1, op)

    conv = functools.partial(_graph_conv_layer, tm=tm_eff, tk=tk_eff,
                             resident_h=resident_h)
    h = conv(adj, h, w1r, w1s, b1, apply_relu=True)
    h = conv(adj, h, w2r, w2s, b2, apply_relu=True)
    h = conv(adj, h, w3r, w3s, b3, apply_relu=False)

    out = _pool_linear(pool, h, w_lin, b_lin, tk=tk_eff)    # [G, op] f32 slab
    return out[:, :out_channels]


def init_params(key, hidden_channels, output_channels):
    """Deterministic parameter init. Weights stored already transposed: [in, out]."""
    def linear_w(k, fan_in, fan_out):
        bound = 1.0 / jnp.sqrt(jnp.float32(fan_in))
        return jax.random.uniform(k, (fan_in, fan_out), jnp.float32, -bound, bound)

    ks = jax.random.split(key, 12)
    h, o, c = hidden_channels, output_channels, INPUT_CHANNELS
    return {
        "w1_rel": linear_w(ks[0], c, h), "w1_root": linear_w(ks[1], c, h),
        "b1": jax.random.uniform(ks[2], (1, h), jnp.float32, -1.0, 1.0) / jnp.sqrt(jnp.float32(c)),
        "w2_rel": linear_w(ks[3], h, h), "w2_root": linear_w(ks[4], h, h),
        "b2": jax.random.uniform(ks[5], (1, h), jnp.float32, -1.0, 1.0) / jnp.sqrt(jnp.float32(h)),
        "w3_rel": linear_w(ks[6], h, h), "w3_root": linear_w(ks[7], h, h),
        "b3": jax.random.uniform(ks[8], (1, h), jnp.float32, -1.0, 1.0) / jnp.sqrt(jnp.float32(h)),
        "w_lin": linear_w(ks[9], h, o),
        "b_lin": jax.random.uniform(ks[10], (1, o), jnp.float32, -1.0, 1.0) / jnp.sqrt(jnp.float32(h)),
    }


def _reference(x, edge_index, edge_weight, batch, params, num_graphs):
    """Pure-JAX reference mirroring the kernel's bf16-input / f32-accumulate math."""
    n = x.shape[0]
    bf = jnp.bfloat16
    adj = (jnp.zeros((n, n), bf)
           .at[edge_index[1], edge_index[0]].add(edge_weight.astype(bf)))
    onehot = (batch[None, :] == jnp.arange(num_graphs)[:, None]).astype(jnp.float32)
    pool = (onehot / jnp.maximum(onehot.sum(1, keepdims=True), 1.0)).astype(bf)

    def conv(h, w_rel, w_root, b):
        h = h.astype(bf)
        agg = jnp.dot(adj, h, preferred_element_type=jnp.float32).astype(bf)
        return (jnp.dot(agg, w_rel.astype(bf), preferred_element_type=jnp.float32)
                + b
                + jnp.dot(h, w_root.astype(bf), preferred_element_type=jnp.float32))

    h = jnp.maximum(conv(x, params["w1_rel"], params["w1_root"], params["b1"]), 0.0).astype(bf)
    h = jnp.maximum(conv(h, params["w2_rel"], params["w2_root"], params["b2"]), 0.0).astype(bf)
    h = conv(h, params["w3_rel"], params["w3_root"], params["b3"]).astype(bf)
    pooled = jnp.dot(pool, h, preferred_element_type=jnp.float32).astype(bf)
    return (jnp.dot(pooled, params["w_lin"].astype(bf),
                    preferred_element_type=jnp.float32) + params["b_lin"])


if __name__ == "__main__":
    key = jax.random.PRNGKey(0)

    def run_case(k, n_nodes, n_edges, hidden, output, num_graphs, **kw):
        k_p, k_x, k_e, k_w = jax.random.split(k, 4)
        params = init_params(k_p, hidden, output)
        x = jax.random.normal(k_x, (n_nodes, INPUT_CHANNELS), jnp.float32)
        edge_index = jax.random.randint(k_e, (2, n_edges), 0, n_nodes, jnp.int32)
        edge_weight = jax.random.uniform(k_w, (n_edges,), jnp.float32, 0.5, 1.5)
        batch = (jnp.arange(n_nodes, dtype=jnp.int32) * num_graphs) // n_nodes

        out = gnn_forward(x, edge_index, batch, params, num_graphs,
                          edge_weight, **kw)
        out = jax.block_until_ready(out)
        assert out.shape == (num_graphs, output)

        ref = _reference(x, edge_index, edge_weight, batch, params, num_graphs)
        assert jnp.allclose(out, ref, atol=2e-2, rtol=2e-2), (
            f"max abs err {jnp.max(jnp.abs(out - ref))}")

    k1, k2, k3 = jax.random.split(key, 3)
    # Small case (the module's toy sizes): single-tile grid, resident h.
    run_case(k1, n_nodes=16, n_edges=40, hidden=32, output=4, num_graphs=2)
    # Medium case exercising the streamed (non-resident) h_src path.
    run_case(k2, n_nodes=300, n_edges=900, hidden=32, output=4, num_graphs=3,
             resident_h=False)
    # Larger case: 3x2 (parallel x reduction) grid with resident h_src and
    # in-kernel pl.ds slicing of the source tile.
    run_case(k3, n_nodes=1500, n_edges=5000, hidden=32, output=4, num_graphs=3)

    print("KERNEL_OK")
</pallas_src>

<mosaic_0001>
module attributes {stable_mosaic.version = 11 : i64} {
  func.func @_graph_conv_kernel(%arg0: i32, %arg1: i32, %arg2: memref<128x128xbf16, #tpu.memory_space<vmem>>, %arg3: memref<128x128xbf16, #tpu.memory_space<vmem>>, %arg4: memref<128x128xbf16, #tpu.memory_space<vmem>>, %arg5: memref<128x128xbf16, #tpu.memory_space<vmem>>, %arg6: memref<128x128xbf16, #tpu.memory_space<vmem>>, %arg7: memref<1x128xf32, #tpu.memory_space<vmem>>, %arg8: memref<128x128xbf16, #tpu.memory_space<vmem>>, %arg9: memref<128x128xf32, #tpu.memory_space<vmem>>) attributes {dimension_semantics = [#tpu.dimension_semantics<parallel>, #tpu.dimension_semantics<arbitrary>], iteration_bounds = array<i64: 1, 1>, scalar_prefetch = 0 : i64, scratch_operands = 1 : i64, tpu.core_type = #tpu.core_type<tc>, window_params = [{transform_indices = @transform_0, window_bounds = array<i64: 128, 128>}, {pipeline_mode = #tpu.pipeline_mode<synchronous>, transform_indices = @transform_1, window_bounds = array<i64: 128, 128>}, {transform_indices = @transform_2, window_bounds = array<i64: 128, 128>}, {pipeline_mode = #tpu.pipeline_mode<synchronous>, transform_indices = @transform_3, window_bounds = array<i64: 128, 128>}, {pipeline_mode = #tpu.pipeline_mode<synchronous>, transform_indices = @transform_4, window_bounds = array<i64: 128, 128>}, {pipeline_mode = #tpu.pipeline_mode<synchronous>, transform_indices = @transform_5, window_bounds = array<i64: 1, 128>}, {transform_indices = @transform_6, window_bounds = array<i64: 128, 128>}]} {
    %c0_i32 = arith.constant 0 : i32
    %0 = arith.cmpi eq, %arg1, %c0_i32 : i32
    %1 = arith.extui %0 : i1 to i32
    %c0_i32_0 = arith.constant 0 : i32
    %2 = arith.cmpi ne, %1, %c0_i32_0 : i32
    scf.if %2 {
      %cst_9 = arith.constant 0.000000e+00 : f32
      %15 = vector.broadcast %cst_9 : f32 to vector<128x128xf32>
      %c0_10 = arith.constant 0 : index
      %c0_11 = arith.constant 0 : index
      %16 = vector.load %arg9[%c0_10, %c0_11] : memref<128x128xf32, #tpu.memory_space<vmem>>, vector<128x128xf32>
      tpu.vector_store %arg9[%c0_10, %c0_11], %15 {strides = array<i32>} : memref<128x128xf32, #tpu.memory_space<vmem>>, vector<128x128xf32>,
    } else {
    }
    %c128_i32 = arith.constant 128 : i32
    %3 = arith.muli %arg1, %c128_i32 : i32
    %4 = tpu.assume_multiple %3, 128 : i32
    %5 = arith.index_cast %4 : i32 to index
    %c0 = arith.constant 0 : index
    %6 = vector.load %arg3[%5, %c0] : memref<128x128xbf16, #tpu.memory_space<vmem>>, vector<128x128xbf16>
    %c0_1 = arith.constant 0 : index
    %c0_2 = arith.constant 0 : index
    %7 = vector.load %arg9[%c0_1, %c0_2] : memref<128x128xf32, #tpu.memory_space<vmem>>, vector<128x128xf32>
    %c0_3 = arith.constant 0 : index
    %c0_4 = arith.constant 0 : index
    %8 = vector.load %arg2[%c0_3, %c0_4] : memref<128x128xbf16, #tpu.memory_space<vmem>>, vector<128x128xbf16>
    %cst = arith.constant dense<0.000000e+00> : vector<128x128xf32>
    %9 = tpu.matmul %8, %6, %cst {dimension_numbers = #tpu.dot_dimension_numbers<[1], [0], [0], [1], [0, 0, 1, 1], [], []>} : vector<128x128xbf16>, vector<128x128xbf16>, vector<128x128xf32> -> vector<128x128xf32>
    %10 = arith.addf %7, %9 : vector<128x128xf32>
    %c0_5 = arith.constant 0 : index
    %c0_6 = arith.constant 0 : index
    %11 = vector.load %arg9[%c0_5, %c0_6] : memref<128x128xf32, #tpu.memory_space<vmem>>, vector<128x128xf32>
    tpu.vector_store %arg9[%c0_5, %c0_6], %10 {strides = array<i32>} : memref<128x128xf32, #tpu.memory_space<vmem>>, vector<128x128xf32>,
    %c0_i32_7 = arith.constant 0 : i32
    %12 = arith.cmpi eq, %arg1, %c0_i32_7 : i32
    %13 = arith.extui %12 : i1 to i32
    %c0_i32_8 = arith.constant 0 : i32
    %14 = arith.cmpi ne, %13, %c0_i32_8 : i32
    scf.if %14 {
      %c0_9 = arith.constant 0 : index
      %c0_10 = arith.constant 0 : index
      %15 = vector.load %arg9[%c0_9, %c0_10] : memref<128x128xf32, #tpu.memory_space<vmem>>, vector<128x128xf32>
      %16 = arith.truncf %15 : vector<128x128xf32> to vector<128x128xbf16>
      %c0_11 = arith.constant 0 : index
      %c0_12 = arith.constant 0 : index
      %17 = vector.load %arg5[%c0_11, %c0_12] : memref<128x128xbf16, #tpu.memory_space<vmem>>, vector<128x128xbf16>
      %cst_13 = arith.constant dense<0.000000e+00> : vector<128x128xf32>
      %18 = tpu.matmul %16, %17, %cst_13 {dimension_numbers = #tpu.dot_dimension_numbers<[1], [0], [0], [1], [0, 0, 1, 1], [], []>} : vector<128x128xbf16>, vector<128x128xbf16>, vector<128x128xf32> -> vector<128x128xf32>
      %c0_14 = arith.constant 0 : index
      %c0_15 = arith.constant 0 : index
      %19 = vector.load %arg4[%c0_14, %c0_15] : memref<128x128xbf16, #tpu.memory_space<vmem>>, vector<128x128xbf16>
      %c0_16 = arith.constant 0 : index
      %c0_17 = arith.constant 0 : index
      %20 = vector.load %arg6[%c0_16, %c0_17] : memref<128x128xbf16, #tpu.memory_space<vmem>>, vector<128x128xbf16>
      %cst_18 = arith.constant dense<0.000000e+00> : vector<128x128xf32>
      %21 = tpu.matmul %19, %20, %cst_18 {dimension_numbers = #tpu.dot_dimension_numbers<[1], [0], [0], [1], [0, 0, 1, 1], [], []>} : vector<128x128xbf16>, vector<128x128xbf16>, vector<128x128xf32> -> vector<128x128xf32>
      %22 = arith.addf %18, %21 : vector<128x128xf32>
      %c0_19 = arith.constant 0 : index
      %c0_20 = arith.constant 0 : index
      %23 = vector.load %arg7[%c0_19, %c0_20] : memref<1x128xf32, #tpu.memory_space<vmem>>, vector<1x128xf32>
      %24 = vector.broadcast %23 : vector<1x128xf32> to vector<128x128xf32>
      %25 = arith.addf %22, %24 : vector<128x128xf32>
      %cst_21 = arith.constant 0.000000e+00 : f32
      %26 = vector.broadcast %cst_21 : f32 to vector<128x128xf32>
      %27 = arith.maximumf %25, %26 : vector<128x128xf32>
      %28 = arith.truncf %27 : vector<128x128xf32> to vector<128x128xbf16>
      %c0_22 = arith.constant 0 : index
      %c0_23 = arith.constant 0 : index
      %29 = vector.load %arg8[%c0_22, %c0_23] : memref<128x128xbf16, #tpu.memory_space<vmem>>, vector<128x128xbf16>
      tpu.vector_store %arg8[%c0_22, %c0_23], %28 {strides = array<i32>} : memref<128x128xbf16, #tpu.memory_space<vmem>>, vector<128x128xbf16>,
    } else {
    }
    return
  }
  func.func @transform_0(%arg0: i32, %arg1: i32) -> (i32, i32) {
    %c0_i32 = arith.constant 0 : i32
    return %arg0, %arg1 : i32, i32
  }
  func.func @transform_1(%arg0: i32, %arg1: i32) -> (i32, i32) {
    %c0_i32 = arith.constant 0 : i32
    %c0_i32_0 = arith.constant 0 : i32
    %c0_i32_1 = arith.constant 0 : i32
    return %c0_i32, %c0_i32_0 : i32, i32
  }
  func.func @transform_2(%arg0: i32, %arg1: i32) -> (i32, i32) {
    %c0_i32 = arith.constant 0 : i32
    %c0_i32_0 = arith.constant 0 : i32
    return %arg0, %c0_i32 : i32, i32
  }
  func.func @transform_3(%arg0: i32, %arg1: i32) -> (i32, i32) {
    %c0_i32 = arith.constant 0 : i32
    %c0_i32_0 = arith.constant 0 : i32
    %c0_i32_1 = arith.constant 0 : i32
    return %c0_i32, %c0_i32_0 : i32, i32
  }
  func.func @transform_4(%arg0: i32, %arg1: i32) -> (i32, i32) {
    %c0_i32 = arith.constant 0 : i32
    %c0_i32_0 = arith.constant 0 : i32
    %c0_i32_1 = arith.constant 0 : i32
    return %c0_i32, %c0_i32_0 : i32, i32
  }
  func.func @transform_5(%arg0: i32, %arg1: i32) -> (i32, i32) {
    %c0_i32 = arith.constant 0 : i32
    %c0_i32_0 = arith.constant 0 : i32
    %c0_i32_1 = arith.constant 0 : i32
    return %c0_i32, %c0_i32_0 : i32, i32
  }
  func.func @transform_6(%arg0: i32, %arg1: i32) -> (i32, i32) {
    %c0_i32 = arith.constant 0 : i32
    %c0_i32_0 = arith.constant 0 : i32
    return %arg0, %c0_i32 : i32, i32
  }
}

</mosaic_0001>

<llo_original>
// kernel: tpu_custom_call.1
$region0: #{tpu_custom_call.1}
  #allocation0 [shape = 'u32[]', space=smem, size = 0x4, offset = 0x4, fixed_abs, tag = 'smem constant byte address 0x4 - core index']
  #allocation1 [shape = 'u32[72,128]{1,0:T(1,128)}', space=vmem, size = 0x9000, scoped, tag = 'internal scratch']
  #allocation2 [shape = 'f32[128,128]{1,0:T(8,128)}', space=vmem, size = 0x10000, scoped, tag = 'scratch operand']
  %s0 = inlined_call_operand.hbm [shape: bf16[128,128], index: 0, kind: input, shape index: {}]
  %s1 = inlined_call_operand.hbm [shape: bf16[128,128], index: 1, kind: input, shape index: {}]
  %s2 = inlined_call_operand.hbm [shape: bf16[128,128], index: 2, kind: input, shape index: {}]
  %s3 = inlined_call_operand.hbm [shape: bf16[128,128], index: 3, kind: input, shape index: {}]
  %s4 = inlined_call_operand.hbm [shape: bf16[128,128], index: 4, kind: input, shape index: {}]
  %s5 = inlined_call_operand.vmem [shape: f32[1,128], index: 5, kind: input, shape index: {}]
  %s6 = inlined_call_operand.hbm [shape: bf16[128,128], index: 6, kind: output, shape index: {}]
  %s7 = sld [smem:[#allocation0]]
  $region62: #{tpu_custom_call.1} parent=0
    _
  %s9 = ssub.s32 1, %s7
  %s10 = scalar_select 0, %s9, %s7
  $region1: #{tpu_custom_call.1} parent=0
    #allocation3 [shape = 'u8[32768]{0}', space=vmem, size = 0x8000, scoped, tag = 'input window, operand 0, single buffered']
    #allocation4 [shape = 's32[1]{0}', space=sflag, size = 0x4, scoped, tag = 'scoped memory for tpu_custom_call.1']
    #allocation5 [shape = 's32[1]{0}', space=sflag, size = 0x4, scoped, tag = 'scoped memory for tpu_custom_call.1']
    #allocation6 [shape = 'u8[32768]{0}', space=vmem, size = 0x8000, scoped, tag = 'input window, operand 1, single buffered']
    #allocation7 [shape = 's32[1]{0}', space=sflag, size = 0x4, scoped, tag = 'scoped memory for tpu_custom_call.1']
    #allocation8 [shape = 'u8[32768]{0}', space=vmem, size = 0x8000, scoped, tag = 'input window, operand 2, single buffered']
    #allocation9 [shape = 'u8[32768]{0}', space=vmem, size = 0x8000, scoped, tag = 'input window, operand 3, single buffered']
    #allocation10 [shape = 's32[1]{0}', space=sflag, size = 0x4, scoped, tag = 'scoped memory for tpu_custom_call.1']
    #allocation11 [shape = 'u8[32768]{0}', space=vmem, size = 0x8000, scoped, tag = 'input window, operand 4, single buffered']
    #allocation12 [shape = 'u8[32768]{0}', space=vmem, size = 0x8000, scoped, tag = 'output window, operand 0, single buffered']
    %11 = vsyncpa [#allocation4], 0
    %12 = vsyncpa [#allocation7], 0
    %13 = vsyncpa [#allocation10], 0
    %14 = vsyncpa [#allocation5], 0
    // Predicated region
    $region2: #{tpu_custom_call.1} parent=1 // pred_check
      _
    $region3: #{tpu_custom_call.1} parent=1 // pred_check_branch
      %16 = sbr.rel (0) target = $region5
    $region4: #{tpu_custom_call.1} parent=1 // pred_region
      %18 = vsyncadd [#allocation4], 0
      %s19 = sshll.u32 %s0, 4
      %s20 = int_to_ptr.hbm [resolvable:$true] %s19
      %s21 = sshll.u32 [#allocation3], 4
      %s22 = int_to_ptr.vmem [resolvable:$true] %s21
      %27 = dma.hbm_to_vmem [thread:$0]  %s20, 1024, %s22, [#allocation4], 64, 64, 4
    $region5: #{tpu_custom_call.1} parent=1 // pred_fallthru
      _
    // Predicated region
    $region6: #{tpu_custom_call.1} parent=1 // pred_check
      _
    $region7: #{tpu_custom_call.1} parent=1 // pred_check_branch
      %29 = sbr.rel (0) target = $region9
    $region8: #{tpu_custom_call.1} parent=1 // pred_region
      %31 = vsyncadd [#allocation7], 0
      %s32 = sshll.u32 %s1, 4
      %s33 = int_to_ptr.hbm [resolvable:$true] %s32
      %s34 = sshll.u32 [#allocation6], 4
      %s35 = int_to_ptr.vmem [resolvable:$true] %s34
      %40 = dma.hbm_to_vmem [thread:$0]  %s33, 1024, %s35, [#allocation7], 64, 64, 4
    $region9: #{tpu_custom_call.1} parent=1 // pred_fallthru
      _
    // Predicated region
    $region10: #{tpu_custom_call.1} parent=1 // pred_check
      _
    $region11: #{tpu_custom_call.1} parent=1 // pred_check_branch
      %42 = sbr.rel (0) target = $region13
    $region12: #{tpu_custom_call.1} parent=1 // pred_region
      %44 = vsyncadd [#allocation7], 0
      %s45 = sshll.u32 %s2, 4
      %s46 = int_to_ptr.hbm [resolvable:$true] %s45
      %s47 = sshll.u32 [#allocation8], 4
      %s48 = int_to_ptr.vmem [resolvable:$true] %s47
      %53 = dma.hbm_to_vmem [thread:$0]  %s46, 1024, %s48, [#allocation7], 64, 64, 4
    $region13: #{tpu_custom_call.1} parent=1 // pred_fallthru
      _
    // Predicated region
    $region14: #{tpu_custom_call.1} parent=1 // pred_check
      _
    $region15: #{tpu_custom_call.1} parent=1 // pred_check_branch
      %55 = sbr.rel (0) target = $region17
    $region16: #{tpu_custom_call.1} parent=1 // pred_region
      %57 = vsyncadd [#allocation10], 0
      %s58 = sshll.u32 %s3, 4
      %s59 = int_to_ptr.hbm [resolvable:$true] %s58
      %s60 = sshll.u32 [#allocation9], 4
      %s61 = int_to_ptr.vmem [resolvable:$true] %s60
      %66 = dma.hbm_to_vmem [thread:$0]  %s59, 1024, %s61, [#allocation10], 64, 64, 4
    $region17: #{tpu_custom_call.1} parent=1 // pred_fallthru
      _
    // Predicated region
    $region18: #{tpu_custom_call.1} parent=1 // pred_check
      _
    $region19: #{tpu_custom_call.1} parent=1 // pred_check_branch
      %68 = sbr.rel (0) target = $region21
    $region20: #{tpu_custom_call.1} parent=1 // pred_region
      %70 = vsyncadd [#allocation10], 0
      %s71 = sshll.u32 %s4, 4
      %s72 = int_to_ptr.hbm [resolvable:$true] %s71
      %s73 = sshll.u32 [#allocation11], 4
      %s74 = int_to_ptr.vmem [resolvable:$true] %s73
      %79 = dma.hbm_to_vmem [thread:$0]  %s72, 1024, %s74, [#allocation10], 64, 64, 4
    $region21: #{tpu_custom_call.1} parent=1 // pred_fallthru
      _
    // Predicated region
    $region22: #{tpu_custom_call.1} parent=1 // pred_check
      _
    $region23: #{tpu_custom_call.1} parent=1 // pred_check_branch
      %81 = sbr.rel (0) target = $region25
    $region24: #{tpu_custom_call.1} parent=1 // pred_region
      _
    $region25: #{tpu_custom_call.1} parent=1 // pred_fallthru
      _
    // Predicated region
    $region26: #{tpu_custom_call.1} parent=1 // pred_check
      _
    $region27: #{tpu_custom_call.1} parent=1 // pred_check_branch
      %83 = sbr.rel (0) target = $region29
    $region28: #{tpu_custom_call.1} parent=1 // pred_region
      %85 = dma.done [#allocation4], 1024
    $region29: #{tpu_custom_call.1} parent=1 // pred_fallthru
      _
    // Predicated region
    $region30: #{tpu_custom_call.1} parent=1 // pred_check
      _
    $region31: #{tpu_custom_call.1} parent=1 // pred_check_branch
      %87 = sbr.rel (0) target = $region33
    $region32: #{tpu_custom_call.1} parent=1 // pred_region
      %89 = dma.done [#allocation7], 1024
    $region33: #{tpu_custom_call.1} parent=1 // pred_fallthru
      _
    // Predicated region
    $region34: #{tpu_custom_call.1} parent=1 // pred_check
      _
    $region35: #{tpu_custom_call.1} parent=1 // pred_check_branch
      %91 = sbr.rel (0) target = $region37
    $region36: #{tpu_custom_call.1} parent=1 // pred_region
      %93 = dma.done [#allocation7], 1024
    $region37: #{tpu_custom_call.1} parent=1 // pred_fallthru
      _
    // Predicated region
    $region38: #{tpu_custom_call.1} parent=1 // pred_check
      _
    $region39: #{tpu_custom_call.1} parent=1 // pred_check_branch
      %95 = sbr.rel (0) target = $region41
    $region40: #{tpu_custom_call.1} parent=1 // pred_region
      %97 = dma.done [#allocation10], 1024
    $region41: #{tpu_custom_call.1} parent=1 // pred_fallthru
      _
    // Predicated region
    $region42: #{tpu_custom_call.1} parent=1 // pred_check
      _
    $region43: #{tpu_custom_call.1} parent=1 // pred_check_branch
      %99 = sbr.rel (0) target = $region45
    $region44: #{tpu_custom_call.1} parent=1 // pred_region
      %101 = dma.done [#allocation10], 1024
    $region45: #{tpu_custom_call.1} parent=1 // pred_fallthru
      _
    %p102 = scmp.eq.s32.totalorder 0, 0
    // Predicated region
    $region46: #{tpu_custom_call.1} parent=1 // pred_check
      %p103 = pneg %p102
    $region47: #{tpu_custom_call.1} parent=1 // pred_check_branch
      %105 = sbr.rel (%p103) target = $region49
    $region48: #{tpu_custom_call.1} parent=1 // pred_region
      %106 = vst [vmem:[#allocation2] sm:$0xff] 0.0
      %107 = vst [vmem:[#allocation2 + $0x8] sm:$0xff] 0.0
      %108 = vst [vmem:[#allocation2 + $0x10] sm:$0xff] 0.0
      %109 = vst [vmem:[#allocation2 + $0x18] sm:$0xff] 0.0
      %110 = vst [vmem:[#allocation2 + $0x20] sm:$0xff] 0.0
      %111 = vst [vmem:[#allocation2 + $0x28] sm:$0xff] 0.0
      %112 = vst [vmem:[#allocation2 + $0x30] sm:$0xff] 0.0
      %113 = vst [vmem:[#allocation2 + $0x38] sm:$0xff] 0.0
      %114 = vst [vmem:[#allocation2 + $0x40] sm:$0xff] 0.0
      %115 = vst [vmem:[#allocation2 + $0x48] sm:$0xff] 0.0
      %116 = vst [vmem:[#allocation2 + $0x50] sm:$0xff] 0.0
      %117 = vst [vmem:[#allocation2 + $0x58] sm:$0xff] 0.0
      %118 = vst [vmem:[#allocation2 + $0x60] sm:$0xff] 0.0
      %119 = vst [vmem:[#allocation2 + $0x68] sm:$0xff] 0.0
      %120 = vst [vmem:[#allocation2 + $0x70] sm:$0xff] 0.0
      %121 = vst [vmem:[#allocation2 + $0x78] sm:$0xff] 0.0
    $region49: #{tpu_custom_call.1} parent=1 // pred_fallthru
      _
    %s122 = smul.u32 0, 128
    %s123 = sshra.s32 %s122, 3
    %s124 = sand.u32 %s122, 7
    %s125 = smul.addr %s123, 4
    %s126 = scalar_lea.vmem [#allocation6], %s125
    %v127 = vld [vmem:[%s126] sm:$0xf]
    %v128 = vld [vmem:[%s126 + $0x4] sm:$0xf]
    %v129 = vld [vmem:[%s126 + $0x8] sm:$0xf]
    %v130 = vld [vmem:[%s126 + $0xc] sm:$0xf]
    %v131 = vld [vmem:[%s126 + $0x10] sm:$0xf]
    %v132 = vld [vmem:[%s126 + $0x14] sm:$0xf]
    %v133 = vld [vmem:[%s126 + $0x18] sm:$0xf]
    %v134 = vld [vmem:[%s126 + $0x1c] sm:$0xf]
    %v135 = vld [vmem:[%s126 + $0x20] sm:$0xf]
    %v136 = vld [vmem:[%s126 + $0x24] sm:$0xf]
    %v137 = vld [vmem:[%s126 + $0x28] sm:$0xf]
    %v138 = vld [vmem:[%s126 + $0x2c] sm:$0xf]
    %v139 = vld [vmem:[%s126 + $0x30] sm:$0xf]
    %v140 = vld [vmem:[%s126 + $0x34] sm:$0xf]
    %v141 = vld [vmem:[%s126 + $0x38] sm:$0xf]
    %v142 = vld [vmem:[%s126 + $0x3c] sm:$0xf]
    %v143 = vld [vmem:[#allocation2] sm:$0xff]
    %v144 = vld [vmem:[#allocation2 + $0x8] sm:$0xff]
    %v145 = vld [vmem:[#allocation2 + $0x10] sm:$0xff]
    %v146 = vld [vmem:[#allocation2 + $0x18] sm:$0xff]
    %v147 = vld [vmem:[#allocation2 + $0x20] sm:$0xff]
    %v148 = vld [vmem:[#allocation2 + $0x28] sm:$0xff]
    %v149 = vld [vmem:[#allocation2 + $0x30] sm:$0xff]
    %v150 = vld [vmem:[#allocation2 + $0x38] sm:$0xff]
    %v151 = vld [vmem:[#allocation2 + $0x40] sm:$0xff]
    %v152 = vld [vmem:[#allocation2 + $0x48] sm:$0xff]
    %v153 = vld [vmem:[#allocation2 + $0x50] sm:$0xff]
    %v154 = vld [vmem:[#allocation2 + $0x58] sm:$0xff]
    %v155 = vld [vmem:[#allocation2 + $0x60] sm:$0xff]
    %v156 = vld [vmem:[#allocation2 + $0x68] sm:$0xff]
    %v157 = vld [vmem:[#allocation2 + $0x70] sm:$0xff]
    %v158 = vld [vmem:[#allocation2 + $0x78] sm:$0xff]
    %v159 = vld [vmem:[#allocation3] sm:$0xf]
    %v160 = vld [vmem:[#allocation3 + $0x4] sm:$0xf]
    %v161 = vld [vmem:[#allocation3 + $0x8] sm:$0xf]
    %v162 = vld [vmem:[#allocation3 + $0xc] sm:$0xf]
    %v163 = vld [vmem:[#allocation3 + $0x10] sm:$0xf]
    %v164 = vld [vmem:[#allocation3 + $0x14] sm:$0xf]
    %v165 = vld [vmem:[#allocation3 + $0x18] sm:$0xf]
    %v166 = vld [vmem:[#allocation3 + $0x1c] sm:$0xf]
    %v167 = vld [vmem:[#allocation3 + $0x20] sm:$0xf]
    %v168 = vld [vmem:[#allocation3 + $0x24] sm:$0xf]
    %v169 = vld [vmem:[#allocation3 + $0x28] sm:$0xf]
    %v170 = vld [vmem:[#allocation3 + $0x2c] sm:$0xf]
    %v171 = vld [vmem:[#allocation3 + $0x30] sm:$0xf]
    %v172 = vld [vmem:[#allocation3 + $0x34] sm:$0xf]
    %v173 = vld [vmem:[#allocation3 + $0x38] sm:$0xf]
    %v174 = vld [vmem:[#allocation3 + $0x3c] sm:$0xf]
    %v191 = vunpack.c.l.b16 %v159
    %v192 = vunpack.c.l.b16 %v160
    %v193 = vunpack.c.l.b16 %v161
    %v194 = vunpack.c.l.b16 %v162
    %v195 = vunpack.c.l.b16 %v163
    %v196 = vunpack.c.l.b16 %v164
    %v197 = vunpack.c.l.b16 %v165
    %v198 = vunpack.c.l.b16 %v166
    %v199 = vunpack.c.l.b16 %v167
    %v200 = vunpack.c.l.b16 %v168
    %v201 = vunpack.c.l.b16 %v169
    %v202 = vunpack.c.l.b16 %v170
    %v203 = vunpack.c.l.b16 %v171
    %v204 = vunpack.c.l.b16 %v172
    %v205 = vunpack.c.l.b16 %v173
    %v206 = vunpack.c.l.b16 %v174
    %v207 = vpack.c.b16 %v192, %v191
    %v208 = vpack.c.b16 %v194, %v193
    %v209 = vpack.c.b16 %v196, %v195
    %v210 = vpack.c.b16 %v198, %v197
    %v211 = vpack.c.b16 %v200, %v199
    %v212 = vpack.c.b16 %v202, %v201
    %v213 = vpack.c.b16 %v204, %v203
    %v214 = vpack.c.b16 %v206, %v205
    %v239 = vunpack.c.l.b16 %v127
    %v240 = vunpack.c.l.b16 %v128
    %v241 = vunpack.c.l.b16 %v129
    %v242 = vunpack.c.l.b16 %v130
    %v243 = vunpack.c.l.b16 %v131
    %v244 = vunpack.c.l.b16 %v132
    %v245 = vunpack.c.l.b16 %v133
    %v246 = vunpack.c.l.b16 %v134
    %v247 = vunpack.c.l.b16 %v135
    %v248 = vunpack.c.l.b16 %v136
    %v249 = vunpack.c.l.b16 %v137
    %v250 = vunpack.c.l.b16 %v138
    %v251 = vunpack.c.l.b16 %v139
    %v252 = vunpack.c.l.b16 %v140
    %v253 = vunpack.c.l.b16 %v141
    %v254 = vunpack.c.l.b16 %v142
    %v255 = vpack.c.b16 %v240, %v239
    %v256 = vpack.c.b16 %v242, %v241
    %v257 = vpack.c.b16 %v244, %v243
    %v258 = vpack.c.b16 %v246, %v245
    %v259 = vpack.c.b16 %v248, %v247
    %v260 = vpack.c.b16 %v250, %v249
    %v261 = vpack.c.b16 %v252, %v251
    %v262 = vpack.c.b16 %v254, %v253
    %271 = vmatpush.bf16.msra.mxu0 %v262
    %272 = vmatpush.bf16.msra.mxu0 %v261
    %273 = vmatpush.bf16.msra.mxu0 %v260
    %274 = vmatpush.bf16.msra.mxu0 %v259
    %275 = vmatpush.bf16.msra.mxu0 %v258
    %276 = vmatpush.bf16.msra.mxu0 %v257
    %277 = vmatpush.bf16.msra.mxu0 %v256
    %278 = vmatpush.bf16.msra.mxu0 %v255
    %279 = vmatmul.bf16.gmra.mxu0 %v207
    %v280 = vpop.f32.mrf.mxu0
    %v281 = vadd.f32 0.0, %v280
    %v282 = vpop.f32.mrf.mxu0
    %v283 = vadd.f32 0.0, %v282
    %284 = vmatmul.bf16.gmra.mxu0 %v208
    %v285 = vpop.f32.mrf.mxu0
    %v286 = vadd.f32 0.0, %v285
    %v287 = vpop.f32.mrf.mxu0
    %v288 = vadd.f32 0.0, %v287
    %289 = vmatmul.bf16.gmra.mxu0 %v209
    %v290 = vpop.f32.mrf.mxu0
    %v291 = vadd.f32 0.0, %v290
    %v292 = vpop.f32.mrf.mxu0
    %v293 = vadd.f32 0.0, %v292
    %294 = vmatmul.bf16.gmra.mxu0 %v210
    %v295 = vpop.f32.mrf.mxu0
    %v296 = vadd.f32 0.0, %v295
    %v297 = vpop.f32.mrf.mxu0
    %v298 = vadd.f32 0.0, %v297
    %299 = vmatmul.bf16.gmra.mxu0 %v211
    %v300 = vpop.f32.mrf.mxu0
    %v301 = vadd.f32 0.0, %v300
    %v302 = vpop.f32.mrf.mxu0
    %v303 = vadd.f32 0.0, %v302
    %304 = vmatmul.bf16.gmra.mxu0 %v212
    %v305 = vpop.f32.mrf.mxu0
    %v306 = vadd.f32 0.0, %v305
    %v307 = vpop.f32.mrf.mxu0
    %v308 = vadd.f32 0.0, %v307
    %309 = vmatmul.bf16.gmra.mxu0 %v213
    %v310 = vpop.f32.mrf.mxu0
    %v311 = vadd.f32 0.0, %v310
    %v312 = vpop.f32.mrf.mxu0
    %v313 = vadd.f32 0.0, %v312
    %314 = vmatmul.bf16.gmra.mxu0 %v214
    %v315 = vpop.f32.mrf.mxu0
    %v316 = vadd.f32 0.0, %v315
    %v317 = vpop.f32.mrf.mxu0
    %v318 = vadd.f32 0.0, %v317
    %319 = vdwg.mxu0
    %v320 = vadd.f32 %v143, %v281
    %v321 = vadd.f32 %v144, %v283
    %v322 = vadd.f32 %v145, %v286
    %v323 = vadd.f32 %v146, %v288
    %v324 = vadd.f32 %v147, %v291
    %v325 = vadd.f32 %v148, %v293
    %v326 = vadd.f32 %v149, %v296
    %v327 = vadd.f32 %v150, %v298
    %v328 = vadd.f32 %v151, %v301
    %v329 = vadd.f32 %v152, %v303
    %v330 = vadd.f32 %v153, %v306
    %v331 = vadd.f32 %v154, %v308
    %v332 = vadd.f32 %v155, %v311
    %v333 = vadd.f32 %v156, %v313
    %v334 = vadd.f32 %v157, %v316
    %v335 = vadd.f32 %v158, %v318
    %336 = vst [vmem:[#allocation2] sm:$0xff] %v320
    %337 = vst [vmem:[#allocation2 + $0x8] sm:$0xff] %v321
    %338 = vst [vmem:[#allocation2 + $0x10] sm:$0xff] %v322
    %339 = vst [vmem:[#allocation2 + $0x18] sm:$0xff] %v323
    %340 = vst [vmem:[#allocation2 + $0x20] sm:$0xff] %v324
    %341 = vst [vmem:[#allocation2 + $0x28] sm:$0xff] %v325
    %342 = vst [vmem:[#allocation2 + $0x30] sm:$0xff] %v326
    %343 = vst [vmem:[#allocation2 + $0x38] sm:$0xff] %v327
    %344 = vst [vmem:[#allocation2 + $0x40] sm:$0xff] %v328
    %345 = vst [vmem:[#allocation2 + $0x48] sm:$0xff] %v329
    %346 = vst [vmem:[#allocation2 + $0x50] sm:$0xff] %v330
    %347 = vst [vmem:[#allocation2 + $0x58] sm:$0xff] %v331
    %348 = vst [vmem:[#allocation2 + $0x60] sm:$0xff] %v332
    %349 = vst [vmem:[#allocation2 + $0x68] sm:$0xff] %v333
    %350 = vst [vmem:[#allocation2 + $0x70] sm:$0xff] %v334
    %351 = vst [vmem:[#allocation2 + $0x78] sm:$0xff] %v335
    // Predicated region
    $region50: #{tpu_custom_call.1} parent=1 // pred_check
      %p352 = pneg %p102
    $region51: #{tpu_custom_call.1} parent=1 // pred_check_branch
      %354 = sbr.rel (%p352) target = $region53
    $region52: #{tpu_custom_call.1} parent=1 // pred_region
      %v355 = vld [vmem:[#allocation2] sm:$0xff]
      %v356 = vld [vmem:[#allocation2 + $0x8] sm:$0xff]
      %v357 = vld [vmem:[#allocation2 + $0x10] sm:$0xff]
      %v358 = vld [vmem:[#allocation2 + $0x18] sm:$0xff]
      %v359 = vld [vmem:[#allocation2 + $0x20] sm:$0xff]
      %v360 = vld [vmem:[#allocation2 + $0x28] sm:$0xff]
      %v361 = vld [vmem:[#allocation2 + $0x30] sm:$0xff]
      %v362 = vld [vmem:[#allocation2 + $0x38] sm:$0xff]
      %v363 = vld [vmem:[#allocation2 + $0x40] sm:$0xff]
      %v364 = vld [vmem:[#allocation2 + $0x48] sm:$0xff]
      %v365 = vld [vmem:[#allocation2 + $0x50] sm:$0xff]
      %v366 = vld [vmem:[#allocation2 + $0x58] sm:$0xff]
      %v367 = vld [vmem:[#allocation2 + $0x60] sm:$0xff]
      %v368 = vld [vmem:[#allocation2 + $0x68] sm:$0xff]
      %v369 = vld [vmem:[#allocation2 + $0x70] sm:$0xff]
      %v370 = vld [vmem:[#allocation2 + $0x78] sm:$0xff]
      %v371 = vpack.c.bf16 %v356, %v355
      %v372 = vpack.c.bf16 %v358, %v357
      %v373 = vpack.c.bf16 %v360, %v359
      %v374 = vpack.c.bf16 %v362, %v361
      %v375 = vpack.c.bf16 %v364, %v363
      %v376 = vpack.c.bf16 %v366, %v365
      %v377 = vpack.c.bf16 %v368, %v367
      %v378 = vpack.c.bf16 %v370, %v369
      %v379 = vld [vmem:[#allocation9] sm:$0xf]
      %v380 = vld [vmem:[#allocation9 + $0x4] sm:$0xf]
      %v381 = vld [vmem:[#allocation9 + $0x8] sm:$0xf]
      %v382 = vld [vmem:[#allocation9 + $0xc] sm:$0xf]
      %v383 = vld [vmem:[#allocation9 + $0x10] sm:$0xf]
      %v384 = vld [vmem:[#allocation9 + $0x14] sm:$0xf]
      %v385 = vld [vmem:[#allocation9 + $0x18] sm:$0xf]
      %v386 = vld [vmem:[#allocation9 + $0x1c] sm:$0xf]
      %v387 = vld [vmem:[#allocation9 + $0x20] sm:$0xf]
      %v388 = vld [vmem:[#allocation9 + $0x24] sm:$0xf]
      %v389 = vld [vmem:[#allocation9 + $0x28] sm:$0xf]
      %v390 = vld [vmem:[#allocation9 + $0x2c] sm:$0xf]
      %v391 = vld [vmem:[#allocation9 + $0x30] sm:$0xf]
      %v392 = vld [vmem:[#allocation9 + $0x34] sm:$0xf]
      %v393 = vld [vmem:[#allocation9 + $0x38] sm:$0xf]
      %v394 = vld [vmem:[#allocation9 + $0x3c] sm:$0xf]
      %v395 = vld [vmem:[#allocation8] sm:$0xf]
      %v396 = vld [vmem:[#allocation8 + $0x4] sm:$0xf]
      %v397 = vld [vmem:[#allocation8 + $0x8] sm:$0xf]
      %v398 = vld [vmem:[#allocation8 + $0xc] sm:$0xf]
      %v399 = vld [vmem:[#allocation8 + $0x10] sm:$0xf]
      %v400 = vld [vmem:[#allocation8 + $0x14] sm:$0xf]
      %v401 = vld [vmem:[#allocation8 + $0x18] sm:$0xf]
      %v402 = vld [vmem:[#allocation8 + $0x1c] sm:$0xf]
      %v403 = vld [vmem:[#allocation8 + $0x20] sm:$0xf]
      %v404 = vld [vmem:[#allocation8 + $0x24] sm:$0xf]
      %v405 = vld [vmem:[#allocation8 + $0x28] sm:$0xf]
      %v406 = vld [vmem:[#allocation8 + $0x2c] sm:$0xf]
      %v407 = vld [vmem:[#allocation8 + $0x30] sm:$0xf]
      %v408 = vld [vmem:[#allocation8 + $0x34] sm:$0xf]
      %v409 = vld [vmem:[#allocation8 + $0x38] sm:$0xf]
      %v410 = vld [vmem:[#allocation8 + $0x3c] sm:$0xf]
      %v411 = vld [vmem:[#allocation11] sm:$0xf]
      %v412 = vld [vmem:[#allocation11 + $0x4] sm:$0xf]
      %v413 = vld [vmem:[#allocation11 + $0x8] sm:$0xf]
      %v414 = vld [vmem:[#allocation11 + $0xc] sm:$0xf]
      %v415 = vld [vmem:[#allocation11 + $0x10] sm:$0xf]
      %v416 = vld [vmem:[#allocation11 + $0x14] sm:$0xf]
      %v417 = vld [vmem:[#allocation11 + $0x18] sm:$0xf]
      %v418 = vld [vmem:[#allocation11 + $0x1c] sm:$0xf]
      %v419 = vld [vmem:[#allocation11 + $0x20] sm:$0xf]
      %v420 = vld [vmem:[#allocation11 + $0x24] sm:$0xf]
      %v421 = vld [vmem:[#allocation11 + $0x28] sm:$0xf]
      %v422 = vld [vmem:[#allocation11 + $0x2c] sm:$0xf]
      %v423 = vld [vmem:[#allocation11 + $0x30] sm:$0xf]
      %v424 = vld [vmem:[#allocation11 + $0x34] sm:$0xf]
      %v425 = vld [vmem:[#allocation11 + $0x38] sm:$0xf]
      %v426 = vld [vmem:[#allocation11 + $0x3c] sm:$0xf]
      %v443 = vunpack.c.l.b16 %v395
      %v444 = vunpack.c.l.b16 %v396
      %v445 = vunpack.c.l.b16 %v397
      %v446 = vunpack.c.l.b16 %v398
      %v447 = vunpack.c.l.b16 %v399
      %v448 = vunpack.c.l.b16 %v400
      %v449 = vunpack.c.l.b16 %v401
      %v450 = vunpack.c.l.b16 %v402
      %v451 = vunpack.c.l.b16 %v403
      %v452 = vunpack.c.l.b16 %v404
      %v453 = vunpack.c.l.b16 %v405
      %v454 = vunpack.c.l.b16 %v406
      %v455 = vunpack.c.l.b16 %v407
      %v456 = vunpack.c.l.b16 %v408
      %v457 = vunpack.c.l.b16 %v409
      %v458 = vunpack.c.l.b16 %v410
      %v459 = vpack.c.b16 %v444, %v443
      %v460 = vpack.c.b16 %v446, %v445
      %v461 = vpack.c.b16 %v448, %v447
      %v462 = vpack.c.b16 %v450, %v449
      %v463 = vpack.c.b16 %v452, %v451
      %v464 = vpack.c.b16 %v454, %v453
      %v465 = vpack.c.b16 %v456, %v455
      %v466 = vpack.c.b16 %v458, %v457
      %v491 = vunpack.c.l.b16 %v411
      %v492 = vunpack.c.l.b16 %v412
      %v493 = vunpack.c.l.b16 %v413
      %v494 = vunpack.c.l.b16 %v414
      %v495 = vunpack.c.l.b16 %v415
      %v496 = vunpack.c.l.b16 %v416
      %v497 = vunpack.c.l.b16 %v417
      %v498 = vunpack.c.l.b16 %v418
      %v499 = vunpack.c.l.b16 %v419
      %v500 = vunpack.c.l.b16 %v420
      %v501 = vunpack.c.l.b16 %v421
      %v502 = vunpack.c.l.b16 %v422
      %v503 = vunpack.c.l.b16 %v423
      %v504 = vunpack.c.l.b16 %v424
      %v505 = vunpack.c.l.b16 %v425
      %v506 = vunpack.c.l.b16 %v426
      %v507 = vpack.c.b16 %v492, %v491
      %v508 = vpack.c.b16 %v494, %v493
      %v509 = vpack.c.b16 %v496, %v495
      %v510 = vpack.c.b16 %v498, %v497
      %v511 = vpack.c.b16 %v500, %v499
      %v512 = vpack.c.b16 %v502, %v501
      %v513 = vpack.c.b16 %v504, %v503
      %v514 = vpack.c.b16 %v506, %v505
      %523 = vmatpush.bf16.msra.mxu0 %v514
      %524 = vmatpush.bf16.msra.mxu0 %v513
      %525 = vmatpush.bf16.msra.mxu0 %v512
      %526 = vmatpush.bf16.msra.mxu0 %v511
      %527 = vmatpush.bf16.msra.mxu0 %v510
      %528 = vmatpush.bf16.msra.mxu0 %v509
      %529 = vmatpush.bf16.msra.mxu0 %v508
      %530 = vmatpush.bf16.msra.mxu0 %v507
      %531 = vmatmul.bf16.gmra.mxu0 %v459
      %v532 = vpop.f32.mrf.mxu0
      %v533 = vadd.f32 0.0, %v532
      %v534 = vpop.f32.mrf.mxu0
      %v535 = vadd.f32 0.0, %v534
      %536 = vmatmul.bf16.gmra.mxu0 %v460
      %v537 = vpop.f32.mrf.mxu0
      %v538 = vadd.f32 0.0, %v537
      %v539 = vpop.f32.mrf.mxu0
      %v540 = vadd.f32 0.0, %v539
      %541 = vmatmul.bf16.gmra.mxu0 %v461
      %v542 = vpop.f32.mrf.mxu0
      %v543 = vadd.f32 0.0, %v542
      %v544 = vpop.f32.mrf.mxu0
      %v545 = vadd.f32 0.0, %v544
      %546 = vmatmul.bf16.gmra.mxu0 %v462
      %v547 = vpop.f32.mrf.mxu0
      %v548 = vadd.f32 0.0, %v547
      %v549 = vpop.f32.mrf.mxu0
      %v550 = vadd.f32 0.0, %v549
      %551 = vmatmul.bf16.gmra.mxu0 %v463
      %v552 = vpop.f32.mrf.mxu0
      %v553 = vadd.f32 0.0, %v552
      %v554 = vpop.f32.mrf.mxu0
      %v555 = vadd.f32 0.0, %v554
      %556 = vmatmul.bf16.gmra.mxu0 %v464
      %v557 = vpop.f32.mrf.mxu0
      %v558 = vadd.f32 0.0, %v557
      %v559 = vpop.f32.mrf.mxu0
      %v560 = vadd.f32 0.0, %v559
      %561 = vmatmul.bf16.gmra.mxu0 %v465
      %v562 = vpop.f32.mrf.mxu0
      %v563 = vadd.f32 0.0, %v562
      %v564 = vpop.f32.mrf.mxu0
      %v565 = vadd.f32 0.0, %v564
      %566 = vmatmul.bf16.gmra.mxu0 %v466
      %v567 = vpop.f32.mrf.mxu0
      %v568 = vadd.f32 0.0, %v567
      %v569 = vpop.f32.mrf.mxu0
      %v570 = vadd.f32 0.0, %v569
      %571 = vdwg.mxu0
      %v588 = vunpack.c.l.b16 %v379
      %v589 = vunpack.c.l.b16 %v380
      %v590 = vunpack.c.l.b16 %v381
      %v591 = vunpack.c.l.b16 %v382
      %v592 = vunpack.c.l.b16 %v383
      %v593 = vunpack.c.l.b16 %v384
      %v594 = vunpack.c.l.b16 %v385
      %v595 = vunpack.c.l.b16 %v386
      %v596 = vunpack.c.l.b16 %v387
      %v597 = vunpack.c.l.b16 %v388
      %v598 = vunpack.c.l.b16 %v389
      %v599 = vunpack.c.l.b16 %v390
      %v600 = vunpack.c.l.b16 %v391
      %v601 = vunpack.c.l.b16 %v392
      %v602 = vunpack.c.l.b16 %v393
      %v603 = vunpack.c.l.b16 %v394
      %v604 = vpack.c.b16 %v589, %v588
      %v605 = vpack.c.b16 %v591, %v590
      %v606 = vpack.c.b16 %v593, %v592
      %v607 = vpack.c.b16 %v595, %v594
      %v608 = vpack.c.b16 %v597, %v596
      %v609 = vpack.c.b16 %v599, %v598
      %v610 = vpack.c.b16 %v601, %v600
      %v611 = vpack.c.b16 %v603, %v602
      %620 = vmatpush.bf16.msra.mxu0 %v611
      %621 = vmatpush.bf16.msra.mxu0 %v610
      %622 = vmatpush.bf16.msra.mxu0 %v609
      %623 = vmatpush.bf16.msra.mxu0 %v608
      %624 = vmatpush.bf16.msra.mxu0 %v607
      %625 = vmatpush.bf16.msra.mxu0 %v606
      %626 = vmatpush.bf16.msra.mxu0 %v605
      %627 = vmatpush.bf16.msra.mxu0 %v604
      %628 = vmatmul.bf16.gmra.mxu0 %v371
      %v629 = vpop.f32.mrf.mxu0
      %v630 = vadd.f32 %v533, %v629
      %v631 = vpop.f32.mrf.mxu0
      %v632 = vadd.f32 %v535, %v631
      %633 = vmatmul.bf16.gmra.mxu0 %v372
      %v634 = vpop.f32.mrf.mxu0
      %v635 = vadd.f32 %v538, %v634
      %v636 = vpop.f32.mrf.mxu0
      %v637 = vadd.f32 %v540, %v636
      %638 = vmatmul.bf16.gmra.mxu0 %v373
      %v639 = vpop.f32.mrf.mxu0
      %v640 = vadd.f32 %v543, %v639
      %v641 = vpop.f32.mrf.mxu0
      %v642 = vadd.f32 %v545, %v641
      %643 = vmatmul.bf16.gmra.mxu0 %v374
      %v644 = vpop.f32.mrf.mxu0
      %v645 = vadd.f32 %v548, %v644
      %v646 = vpop.f32.mrf.mxu0
      %v647 = vadd.f32 %v550, %v646
      %648 = vmatmul.bf16.gmra.mxu0 %v375
      %v649 = vpop.f32.mrf.mxu0
      %v650 = vadd.f32 %v553, %v649
      %v651 = vpop.f32.mrf.mxu0
      %v652 = vadd.f32 %v555, %v651
      %653 = vmatmul.bf16.gmra.mxu0 %v376
      %v654 = vpop.f32.mrf.mxu0
      %v655 = vadd.f32 %v558, %v654
      %v656 = vpop.f32.mrf.mxu0
      %v657 = vadd.f32 %v560, %v656
      %658 = vmatmul.bf16.gmra.mxu0 %v377
      %v659 = vpop.f32.mrf.mxu0
      %v660 = vadd.f32 %v563, %v659
      %v661 = vpop.f32.mrf.mxu0
      %v662 = vadd.f32 %v565, %v661
      %663 = vmatmul.bf16.gmra.mxu0 %v378
      %v664 = vpop.f32.mrf.mxu0
      %v665 = vadd.f32 %v568, %v664
      %v666 = vpop.f32.mrf.mxu0
      %v667 = vadd.f32 %v570, %v666
      %668 = vdwg.mxu0
      %v669 = vld [vmem:[%s5] sm:$0x1]
      %v671 = vperm.slane %v669, 0
      %v673 = vadd.f32 %v630, %v671
      %v674 = vadd.f32 %v632, %v671
      %v675 = vadd.f32 %v635, %v671
      %v676 = vadd.f32 %v637, %v671
      %v677 = vadd.f32 %v640, %v671
      %v678 = vadd.f32 %v642, %v671
      %v679 = vadd.f32 %v645, %v671
      %v680 = vadd.f32 %v647, %v671
      %v681 = vadd.f32 %v650, %v671
      %v682 = vadd.f32 %v652, %v671
      %v683 = vadd.f32 %v655, %v671
      %v684 = vadd.f32 %v657, %v671
      %v685 = vadd.f32 %v660, %v671
      %v686 = vadd.f32 %v662, %v671
      %v687 = vadd.f32 %v665, %v671
      %v688 = vadd.f32 %v667, %v671
      %v689 = vmax.f32 %v673, 0.0
      %v690 = vmax.f32 %v674, 0.0
      %v691 = vmax.f32 %v675, 0.0
      %v692 = vmax.f32 %v676, 0.0
      %v693 = vmax.f32 %v677, 0.0
      %v694 = vmax.f32 %v678, 0.0
      %v695 = vmax.f32 %v679, 0.0
      %v696 = vmax.f32 %v680, 0.0
      %v697 = vmax.f32 %v681, 0.0
      %v698 = vmax.f32 %v682, 0.0
      %v699 = vmax.f32 %v683, 0.0
      %v700 = vmax.f32 %v684, 0.0
      %v701 = vmax.f32 %v685, 0.0
      %v702 = vmax.f32 %v686, 0.0
      %v703 = vmax.f32 %v687, 0.0
      %v704 = vmax.f32 %v688, 0.0
      %v705 = vpack.c.bf16 %v689, %v689
      %v706 = vpack.c.bf16 %v690, %v690
      %v707 = vpack.c.bf16 %v691, %v691
      %v708 = vpack.c.bf16 %v692, %v692
      %v709 = vpack.c.bf16 %v693, %v693
      %v710 = vpack.c.bf16 %v694, %v694
      %v711 = vpack.c.bf16 %v695, %v695
      %v712 = vpack.c.bf16 %v696, %v696
      %v713 = vpack.c.bf16 %v697, %v697
      %v714 = vpack.c.bf16 %v698, %v698
      %v715 = vpack.c.bf16 %v699, %v699
      %v716 = vpack.c.bf16 %v700, %v700
      %v717 = vpack.c.bf16 %v701, %v701
      %v718 = vpack.c.bf16 %v702, %v702
      %v719 = vpack.c.bf16 %v703, %v703
      %v720 = vpack.c.bf16 %v704, %v704
      %721 = vst [vmem:[#allocation12] sm:$0xf] %v705
      %722 = vst [vmem:[#allocation12 + $0x4] sm:$0xf] %v706
      %723 = vst [vmem:[#allocation12 + $0x8] sm:$0xf] %v707
      %724 = vst [vmem:[#allocation12 + $0xc] sm:$0xf] %v708
      %725 = vst [vmem:[#allocation12 + $0x10] sm:$0xf] %v709
      %726 = vst [vmem:[#allocation12 + $0x14] sm:$0xf] %v710
      %727 = vst [vmem:[#allocation12 + $0x18] sm:$0xf] %v711
      %728 = vst [vmem:[#allocation12 + $0x1c] sm:$0xf] %v712
      %729 = vst [vmem:[#allocation12 + $0x20] sm:$0xf] %v713
      %730 = vst [vmem:[#allocation12 + $0x24] sm:$0xf] %v714
      %731 = vst [vmem:[#allocation12 + $0x28] sm:$0xf] %v715
      %732 = vst [vmem:[#allocation12 + $0x2c] sm:$0xf] %v716
      %733 = vst [vmem:[#allocation12 + $0x30] sm:$0xf] %v717
      %734 = vst [vmem:[#allocation12 + $0x34] sm:$0xf] %v718
      %735 = vst [vmem:[#allocation12 + $0x38] sm:$0xf] %v719
      %736 = vst [vmem:[#allocation12 + $0x3c] sm:$0xf] %v720
    $region53: #{tpu_custom_call.1} parent=1 // pred_fallthru
      _
    // Predicated region
    $region54: #{tpu_custom_call.1} parent=1 // pred_check
      _
    $region55: #{tpu_custom_call.1} parent=1 // pred_check_branch
      %738 = sbr.rel (0) target = $region57
    $region56: #{tpu_custom_call.1} parent=1 // pred_region
      %740 = vsyncadd [#allocation5], 0
      %s741 = sshll.u32 [#allocation12], 4
      %s742 = int_to_ptr.vmem [resolvable:$true] %s741
      %s743 = sshll.u32 %s6, 4
      %s744 = int_to_ptr.hbm [resolvable:$true] %s743
      %749 = dma.vmem_to_hbm [thread:$0]  %s742, 1024, %s744, [#allocation5], 64, 64, 4
    $region57: #{tpu_custom_call.1} parent=1 // pred_fallthru
      _
    // Predicated region
    $region58: #{tpu_custom_call.1} parent=1 // pred_check
      _
    $region59: #{tpu_custom_call.1} parent=1 // pred_check_branch
      %751 = sbr.rel (0) target = $region61
    $region60: #{tpu_custom_call.1} parent=1 // pred_region
      %753 = dma.done [#allocation5], 1024
    $region61: #{tpu_custom_call.1} parent=1 // pred_fallthru
      _
    %754 = vsyncpa [#allocation4], 1
    %755 = vsyncpa [#allocation7], 1
    %756 = vsyncpa [#allocation10], 1
    %757 = vsyncpa [#allocation5], 1

</llo_original>
